<compile_context>
chip_gen: v7x
topology: tpu7x:2x2x1
jax: 0.10.0
libtpu: 0.0.40
codegen_flags: <defaults>
</compile_context>

<pallas_src>
import functools

import jax
import jax.numpy as jnp
from jax.experimental import pallas as pl
from jax.experimental.pallas import tpu as pltpu


def _round_up(v, m):
    return (v + m - 1) // m * m


def duq_kernel(x_ref, wf_ref, bf_ref, wr_ref, emb_ref, s_ref,
               out_ref, z_acc_ref, *, inv_two_sigma_sq):
    """One (batch-block, Din-block) grid step.

    Grid axis 0: batch tiles ("parallel").
    Grid axis 1: Din contraction tiles ("arbitrary", reduction axis last).
    """
    d = pl.program_id(1)

    # ---- init f32 accumulator on the first reduction step -------------------
    @pl.when(d == 0)
    def _():
        z_acc_ref[...] = jnp.zeros_like(z_acc_ref)

    # ---- feature extractor stand-in: z += x_tile @ Wf_tile (bf16 MXU, f32 acc)
    z_acc_ref[...] += jnp.dot(x_ref[...], wf_ref[...],
                              preferred_element_type=jnp.float32)

    # ---- finalize on the last reduction step: bias + relu + RBF head --------
    @pl.when(d == pl.num_programs(1) - 1)
    def _():
        z = jnp.maximum(z_acc_ref[...] + bf_ref[...], 0.0)            # (bB, Fp) f32
        # einsum('ij,mnj->imn', z, W) with (m, n) flattened -> (bB, C*K)
        zp = jnp.dot(z.astype(jnp.bfloat16), wr_ref[...],
                     preferred_element_type=jnp.float32)
        diff = zp - emb_ref[...]
        # mean over the centroid axis expressed as a matmul against the
        # grouped-averaging matrix S (stays on the MXU, no in-kernel reshape);
        # tiny, so f32 inputs are fine.
        d2 = jnp.dot(diff * diff, s_ref[...],
                     preferred_element_type=jnp.float32)              # (bB, Kp)
        out_ref[...] = jnp.exp(-d2 * inv_two_sigma_sq)


def resnet_duq_forward(x, params, *, sigma, block_b=128, block_d=512):
    """Returns (outputs (B, K) f32, predictions (B,) i32) — like the torch module."""
    B = x.shape[0]
    x_flat = x.reshape(B, -1).astype(jnp.float32)
    Din = x_flat.shape[1]

    Wf, bf, W, m, N = (params["Wf"], params["bf"], params["W"],
                       params["m"], params["N"])
    C, K, F = W.shape
    CK = C * K

    # ---- padded / tiled sizes (sublane granule 16 for bf16, lane granule 128)
    Bp = _round_up(B, 16)
    block_b = min(block_b, Bp)
    Bp = _round_up(Bp, block_b)
    block_d = min(block_d, _round_up(Din, 128))
    Dinp = _round_up(Din, block_d)
    Fp = _round_up(F, 128)
    CKp = _round_up(CK, 128)
    Kp = _round_up(K, 128)
    grid = (Bp // block_b, Dinp // block_d)

    # ---- operand prep: zero-pad; bf16 for MXU-fed operands -------------------
    x_p = jnp.zeros((Bp, Dinp), jnp.bfloat16).at[:B, :Din].set(
        x_flat.astype(jnp.bfloat16))
    wf_p = jnp.zeros((Dinp, Fp), jnp.bfloat16).at[:Din, :F].set(
        Wf.astype(jnp.bfloat16))
    bf_p = jnp.zeros((1, Fp), jnp.float32).at[:, :F].set(
        bf.reshape(1, F).astype(jnp.float32))

    # RBF head operands: Wr column index = c*K + k; emb uses the same layout;
    # S is the grouped-mean matrix (mean over the centroid axis, weight 1/C).
    Wr = W.reshape(CK, F).T                                            # (F, CK)
    wr_p = jnp.zeros((Fp, CKp), jnp.bfloat16).at[:F, :CK].set(
        Wr.astype(jnp.bfloat16))
    emb = (m / N[None, :]).reshape(1, CK).astype(jnp.float32)
    emb_p = jnp.zeros((1, CKp), jnp.float32).at[:, :CK].set(emb)
    S = jnp.where(jnp.arange(CK)[:, None] % K == jnp.arange(K)[None, :],
                  1.0 / C, 0.0).astype(jnp.float32)                    # (CK, K)
    s_p = jnp.zeros((CKp, Kp), jnp.float32).at[:CK, :K].set(S)

    kernel = functools.partial(
        duq_kernel,
        inv_two_sigma_sq=1.0 / (2.0 * float(sigma) * float(sigma)),
    )

    cost = pl.CostEstimate(
        flops=2 * Bp * Dinp * Fp + 2 * Bp * Fp * CKp + 2 * Bp * CKp * Kp,
        transcendentals=Bp * Kp,
        bytes_accessed=(x_p.size * 2 + wf_p.size * 2 + wr_p.size * 2
                        + (bf_p.size + emb_p.size + s_p.size) * 4
                        + Bp * Kp * 4),
    )

    out_p = pl.pallas_call(
        kernel,
        grid=grid,
        in_specs=[
            pl.BlockSpec((block_b, block_d), lambda b, d: (b, d)),   # x tile
            pl.BlockSpec((block_d, Fp),      lambda b, d: (d, 0)),   # Wf tile
            pl.BlockSpec((1, Fp),            lambda b, d: (0, 0)),   # bias (const)
            pl.BlockSpec((Fp, CKp),          lambda b, d: (0, 0)),   # Wr   (const)
            pl.BlockSpec((1, CKp),           lambda b, d: (0, 0)),   # emb  (const)
            pl.BlockSpec((CKp, Kp),          lambda b, d: (0, 0)),   # S    (const)
        ],
        out_specs=pl.BlockSpec((block_b, Kp), lambda b, d: (b, 0)),
        out_shape=jax.ShapeDtypeStruct((Bp, Kp), jnp.float32),
        scratch_shapes=[pltpu.VMEM((block_b, Fp), jnp.float32)],      # z accumulator
        compiler_params=pltpu.CompilerParams(
            dimension_semantics=("parallel", "arbitrary"),
            vmem_limit_bytes=32 * 1024 * 1024,
        ),
        cost_estimate=cost,
    )(x_p, wf_p, bf_p, wr_p, emb_p, s_p)

    out = out_p[:B, :K]
    pred = jnp.argmax(out, axis=1).astype(jnp.int32)
    return out, pred


def reference_f32(x, params, sigma):
    """Pure-JAX f32 mirror of the torch forward() (original module semantics)."""
    B = x.shape[0]
    z = jnp.maximum(x.reshape(B, -1) @ params["Wf"] + params["bf"], 0.0)
    zp = jnp.einsum("ij,mnj->imn", z, params["W"])
    emb = params["m"] / params["N"][None, :]
    diff = zp - emb[None]
    out = jnp.exp(-(diff ** 2).mean(1) / (2.0 * sigma ** 2))
    return out, jnp.argmax(out, axis=1)


def reference_bf16(x, params, sigma):
    """Precision-matched reference: same bf16 MXU operands, f32 accumulation."""
    B = x.shape[0]
    C, K, F = params["W"].shape
    xb = x.reshape(B, -1).astype(jnp.bfloat16)
    wfb = params["Wf"].astype(jnp.bfloat16)
    z = jnp.dot(xb, wfb, preferred_element_type=jnp.float32) + params["bf"]
    z = jnp.maximum(z, 0.0)
    wr = params["W"].reshape(C * K, F).T.astype(jnp.bfloat16)
    zp = jnp.dot(z.astype(jnp.bfloat16), wr, preferred_element_type=jnp.float32)
    emb = (params["m"] / params["N"][None, :]).reshape(1, C * K)
    diff = zp - emb
    d2 = (diff * diff).reshape(B, C, K).mean(axis=1)
    out = jnp.exp(-d2 / (2.0 * sigma ** 2))
    return out, jnp.argmax(out, axis=1)


if __name__ == "__main__":
    key = jax.random.PRNGKey(0)
    B, Cin, H, Wim = 2, 4, 16, 16       # x: (2, 4, 16, 16) NCHW
    F = 32                              # model_output_size
    C = 16                              # centroid_size
    K = 8                               # num_classes
    sigma = 0.1                         # length_scale
    # gamma (0.999) only affects update_embeddings(), not forward()

    kx, kw, kwf, km = jax.random.split(key, 4)
    x = jax.random.normal(kx, (B, Cin, H, Wim), jnp.float32)

    # W: kaiming_normal_ (relu gain), fan_in = size(1) * prod(size(2:)) = K * F
    W = jax.random.normal(kw, (C, K, F), jnp.float32) * jnp.sqrt(2.0 / (K * F))
    # buffers: N = 13, m ~ N(0, 0.05), then m = m * N
    N = jnp.full((K,), 13.0, jnp.float32)
    m = jax.random.normal(km, (C, K), jnp.float32) * 0.05 * N[None, :]
    # linear feature-extractor stand-in
    Din = Cin * H * Wim
    Wf = jax.random.normal(kwf, (Din, F), jnp.float32) * 0.02
    bf = jnp.zeros((F,), jnp.float32)

    params = dict(Wf=Wf, bf=bf, W=W, m=m, N=N)

    out, pred = resnet_duq_forward(x, params, sigma=sigma)
    jax.block_until_ready((out, pred))

    ref_out, ref_pred = reference_bf16(x, params, sigma)   # precision-matched
    f32_out, f32_pred = reference_f32(x, params, sigma)    # original semantics

    assert out.shape == (B, K) and pred.shape == (B,)
    # tight check vs. the precision-matched reference (validates kernel structure)
    assert jnp.allclose(out, ref_out, atol=1e-3, rtol=2e-2)
    # loose sanity check vs. the full-f32 module semantics (bf16 input rounding)
    assert jnp.allclose(out, f32_out, atol=2e-2, rtol=1e-1)
    assert jnp.array_equal(pred, ref_pred.astype(jnp.int32))

    print("KERNEL_OK")
</pallas_src>

<mosaic_0001>
module attributes {stable_mosaic.version = 11 : i64} {
  func.func @duq_kernel(%arg0: i32, %arg1: i32, %arg2: memref<16x512xbf16, #tpu.memory_space<vmem>>, %arg3: memref<512x128xbf16, #tpu.memory_space<vmem>>, %arg4: memref<1x128xf32, #tpu.memory_space<vmem>>, %arg5: memref<128x128xbf16, #tpu.memory_space<vmem>>, %arg6: memref<1x128xf32, #tpu.memory_space<vmem>>, %arg7: memref<128x128xf32, #tpu.memory_space<vmem>>, %arg8: memref<16x128xf32, #tpu.memory_space<vmem>>, %arg9: memref<16x128xf32, #tpu.memory_space<vmem>>) attributes {dimension_semantics = [#tpu.dimension_semantics<parallel>, #tpu.dimension_semantics<arbitrary>], iteration_bounds = array<i64: 1, 2>, scalar_prefetch = 0 : i64, scratch_operands = 1 : i64, tpu.core_type = #tpu.core_type<tc>, window_params = [{transform_indices = @transform_0, window_bounds = array<i64: 16, 512>}, {transform_indices = @transform_1, window_bounds = array<i64: 512, 128>}, {pipeline_mode = #tpu.pipeline_mode<synchronous>, transform_indices = @transform_2, window_bounds = array<i64: 1, 128>}, {pipeline_mode = #tpu.pipeline_mode<synchronous>, transform_indices = @transform_3, window_bounds = array<i64: 128, 128>}, {pipeline_mode = #tpu.pipeline_mode<synchronous>, transform_indices = @transform_4, window_bounds = array<i64: 1, 128>}, {pipeline_mode = #tpu.pipeline_mode<synchronous>, transform_indices = @transform_5, window_bounds = array<i64: 128, 128>}, {transform_indices = @transform_6, window_bounds = array<i64: 16, 128>}]} {
    %c0_i32 = arith.constant 0 : i32
    %0 = arith.cmpi eq, %arg1, %c0_i32 : i32
    %1 = arith.extui %0 : i1 to i32
    %c0_i32_0 = arith.constant 0 : i32
    %2 = arith.cmpi ne, %1, %c0_i32_0 : i32
    scf.if %2 {
      %cst_9 = arith.constant 0.000000e+00 : f32
      %12 = vector.broadcast %cst_9 : f32 to vector<16x128xf32>
      %c0_10 = arith.constant 0 : index
      %c0_11 = arith.constant 0 : index
      %13 = vector.load %arg9[%c0_10, %c0_11] : memref<16x128xf32, #tpu.memory_space<vmem>>, vector<16x128xf32>
      tpu.vector_store %arg9[%c0_10, %c0_11], %12 {strides = array<i32>} : memref<16x128xf32, #tpu.memory_space<vmem>>, vector<16x128xf32>,
    } else {
    }
    %c0 = arith.constant 0 : index
    %c0_1 = arith.constant 0 : index
    %3 = vector.load %arg9[%c0, %c0_1] : memref<16x128xf32, #tpu.memory_space<vmem>>, vector<16x128xf32>
    %c0_2 = arith.constant 0 : index
    %c0_3 = arith.constant 0 : index
    %4 = vector.load %arg2[%c0_2, %c0_3] : memref<16x512xbf16, #tpu.memory_space<vmem>>, vector<16x512xbf16>
    %c0_4 = arith.constant 0 : index
    %c0_5 = arith.constant 0 : index
    %5 = vector.load %arg3[%c0_4, %c0_5] : memref<512x128xbf16, #tpu.memory_space<vmem>>, vector<512x128xbf16>
    %cst = arith.constant dense<0.000000e+00> : vector<16x128xf32>
    %6 = tpu.matmul %4, %5, %cst {dimension_numbers = #tpu.dot_dimension_numbers<[1], [0], [0], [1], [0, 0, 1, 1], [], []>} : vector<16x512xbf16>, vector<512x128xbf16>, vector<16x128xf32> -> vector<16x128xf32>
    %7 = arith.addf %3, %6 : vector<16x128xf32>
    %c0_6 = arith.constant 0 : index
    %c0_7 = arith.constant 0 : index
    %8 = vector.load %arg9[%c0_6, %c0_7] : memref<16x128xf32, #tpu.memory_space<vmem>>, vector<16x128xf32>
    tpu.vector_store %arg9[%c0_6, %c0_7], %7 {strides = array<i32>} : memref<16x128xf32, #tpu.memory_space<vmem>>, vector<16x128xf32>,
    %c1_i32 = arith.constant 1 : i32
    %9 = arith.cmpi eq, %arg1, %c1_i32 : i32
    %10 = arith.extui %9 : i1 to i32
    %c0_i32_8 = arith.constant 0 : i32
    %11 = arith.cmpi ne, %10, %c0_i32_8 : i32
    scf.if %11 {
      %c0_9 = arith.constant 0 : index
      %c0_10 = arith.constant 0 : index
      %12 = vector.load %arg9[%c0_9, %c0_10] : memref<16x128xf32, #tpu.memory_space<vmem>>, vector<16x128xf32>
      %c0_11 = arith.constant 0 : index
      %c0_12 = arith.constant 0 : index
      %13 = vector.load %arg4[%c0_11, %c0_12] : memref<1x128xf32, #tpu.memory_space<vmem>>, vector<1x128xf32>
      %14 = vector.broadcast %13 : vector<1x128xf32> to vector<16x128xf32>
      %15 = arith.addf %12, %14 : vector<16x128xf32>
      %cst_13 = arith.constant 0.000000e+00 : f32
      %16 = vector.broadcast %cst_13 : f32 to vector<16x128xf32>
      %17 = arith.maximumf %15, %16 : vector<16x128xf32>
      %18 = arith.truncf %17 : vector<16x128xf32> to vector<16x128xbf16>
      %c0_14 = arith.constant 0 : index
      %c0_15 = arith.constant 0 : index
      %19 = vector.load %arg5[%c0_14, %c0_15] : memref<128x128xbf16, #tpu.memory_space<vmem>>, vector<128x128xbf16>
      %cst_16 = arith.constant dense<0.000000e+00> : vector<16x128xf32>
      %20 = tpu.matmul %18, %19, %cst_16 {dimension_numbers = #tpu.dot_dimension_numbers<[1], [0], [0], [1], [0, 0, 1, 1], [], []>} : vector<16x128xbf16>, vector<128x128xbf16>, vector<16x128xf32> -> vector<16x128xf32>
      %c0_17 = arith.constant 0 : index
      %c0_18 = arith.constant 0 : index
      %21 = vector.load %arg6[%c0_17, %c0_18] : memref<1x128xf32, #tpu.memory_space<vmem>>, vector<1x128xf32>
      %22 = vector.broadcast %21 : vector<1x128xf32> to vector<16x128xf32>
      %23 = arith.subf %20, %22 : vector<16x128xf32>
      %24 = arith.mulf %23, %23 : vector<16x128xf32>
      %c0_19 = arith.constant 0 : index
      %c0_20 = arith.constant 0 : index
      %25 = vector.load %arg7[%c0_19, %c0_20] : memref<128x128xf32, #tpu.memory_space<vmem>>, vector<128x128xf32>
      %cst_21 = arith.constant dense<0.000000e+00> : vector<16x128xf32>
      %26 = tpu.matmul %24, %25, %cst_21 {dimension_numbers = #tpu.dot_dimension_numbers<[1], [0], [0], [1], [0, 0, 1, 1], [], []>} : vector<16x128xf32>, vector<128x128xf32>, vector<16x128xf32> -> vector<16x128xf32>
      %cst_22 = arith.constant 0.000000e+00 : f32
      %27 = vector.broadcast %cst_22 : f32 to vector<16x128xf32>
      %28 = arith.subf %27, %26 : vector<16x128xf32>
      %cst_23 = arith.constant 5.000000e+01 : f32
      %29 = vector.broadcast %cst_23 : f32 to vector<16x128xf32>
      %30 = arith.mulf %28, %29 : vector<16x128xf32>
      %31 = math.exp %30 : vector<16x128xf32>
      %c0_24 = arith.constant 0 : index
      %c0_25 = arith.constant 0 : index
      %32 = vector.load %arg8[%c0_24, %c0_25] : memref<16x128xf32, #tpu.memory_space<vmem>>, vector<16x128xf32>
      tpu.vector_store %arg8[%c0_24, %c0_25], %31 {strides = array<i32>} : memref<16x128xf32, #tpu.memory_space<vmem>>, vector<16x128xf32>,
    } else {
    }
    return
  }
  func.func @transform_0(%arg0: i32, %arg1: i32) -> (i32, i32) {
    %c0_i32 = arith.constant 0 : i32
    return %arg0, %arg1 : i32, i32
  }
  func.func @transform_1(%arg0: i32, %arg1: i32) -> (i32, i32) {
    %c0_i32 = arith.constant 0 : i32
    %c0_i32_0 = arith.constant 0 : i32
    return %arg1, %c0_i32 : i32, i32
  }
  func.func @transform_2(%arg0: i32, %arg1: i32) -> (i32, i32) {
    %c0_i32 = arith.constant 0 : i32
    %c0_i32_0 = arith.constant 0 : i32
    %c0_i32_1 = arith.constant 0 : i32
    return %c0_i32, %c0_i32_0 : i32, i32
  }
  func.func @transform_3(%arg0: i32, %arg1: i32) -> (i32, i32) {
    %c0_i32 = arith.constant 0 : i32
    %c0_i32_0 = arith.constant 0 : i32
    %c0_i32_1 = arith.constant 0 : i32
    return %c0_i32, %c0_i32_0 : i32, i32
  }
  func.func @transform_4(%arg0: i32, %arg1: i32) -> (i32, i32) {
    %c0_i32 = arith.constant 0 : i32
    %c0_i32_0 = arith.constant 0 : i32
    %c0_i32_1 = arith.constant 0 : i32
    return %c0_i32, %c0_i32_0 : i32, i32
  }
  func.func @transform_5(%arg0: i32, %arg1: i32) -> (i32, i32) {
    %c0_i32 = arith.constant 0 : i32
    %c0_i32_0 = arith.constant 0 : i32
    %c0_i32_1 = arith.constant 0 : i32
    return %c0_i32, %c0_i32_0 : i32, i32
  }
  func.func @transform_6(%arg0: i32, %arg1: i32) -> (i32, i32) {
    %c0_i32 = arith.constant 0 : i32
    %c0_i32_0 = arith.constant 0 : i32
    return %arg0, %c0_i32 : i32, i32
  }
}

</mosaic_0001>

<llo_original>
// kernel: tpu_custom_call.1
$region0: #{tpu_custom_call.1}
  #allocation0 [shape = 'u32[]', space=smem, size = 0x4, offset = 0x4, fixed_abs, tag = 'smem constant byte address 0x4 - core index']
  #allocation1 [shape = 'u32[144,128]{1,0:T(1,128)}', space=vmem, size = 0x12000, scoped, tag = 'internal scratch']
  #allocation2 [shape = 'f32[16,128]{1,0:T(8,128)}', space=vmem, size = 0x2000, scoped, tag = 'scratch operand']
  %s0 = inlined_call_operand.hbm [shape: bf16[16,1024], index: 0, kind: input, shape index: {}]
  %s1 = inlined_call_operand.hbm [shape: bf16[1024,128], index: 1, kind: input, shape index: {}]
  %s2 = inlined_call_operand.vmem [shape: f32[1,128], index: 2, kind: input, shape index: {}]
  %s3 = inlined_call_operand.hbm [shape: bf16[128,128], index: 3, kind: input, shape index: {}]
  %s4 = inlined_call_operand.vmem [shape: f32[1,128], index: 4, kind: input, shape index: {}]
  %s5 = inlined_call_operand.hbm [shape: f32[128,128], index: 5, kind: input, shape index: {}]
  %s6 = inlined_call_operand.hbm [shape: f32[16,128], index: 6, kind: output, shape index: {}]
  %s7 = sld [smem:[#allocation0]]
  $region81: #{tpu_custom_call.1} parent=0
    _
  %s9 = ssub.s32 1, %s7
  %s10 = scalar_select 0, %s9, %s7
  $region1: #{tpu_custom_call.1} parent=0
    #allocation3 [shape = 'u8[32768]{0}', space=vmem, size = 0x8000, scoped, tag = 'input window, operand 0']
    #allocation4 [shape = 's32[2]{0}', space=sflag, size = 0x8, scoped, tag = 'scoped memory for tpu_custom_call.1']
    #allocation5 [shape = 's32[2]{0}', space=sflag, size = 0x8, scoped, tag = 'scoped memory for tpu_custom_call.1']
    #allocation6 [shape = 'u8[262144]{0}', space=vmem, size = 0x40000, scoped, tag = 'input window, operand 1']
    #allocation7 [shape = 's32[2]{0}', space=sflag, size = 0x8, scoped, tag = 'scoped memory for tpu_custom_call.1']
    #allocation8 [shape = 'u8[32768]{0}', space=vmem, size = 0x8000, scoped, tag = 'input window, operand 3, single buffered']
    #allocation9 [shape = 'u8[65536]{0}', space=vmem, size = 0x10000, scoped, tag = 'input window, operand 5, single buffered']
    #allocation10 [shape = 's32[1]{0}', space=sflag, size = 0x4, scoped, tag = 'scoped memory for tpu_custom_call.1']
    #allocation11 [shape = 'u8[8192]{0}', space=vmem, size = 0x2000, scoped, tag = 'output window, operand 0, single buffered']
    %11 = vsyncpa [#allocation4], 0
    %s12 = scalar_lea.sflag [#allocation4], 1
    %13 = vsyncpa %s12, 0
    %14 = vsyncpa [#allocation7], 0
    %s15 = scalar_lea.sflag [#allocation7], 1
    %16 = vsyncpa %s15, 0
    %17 = vsyncpa [#allocation10], 0
    %18 = vsyncpa [#allocation5], 0
    loop: start=0, step=1, limit=4
    $region2: #{tpu_custom_call.1} parent=1 // loop_pre_header
      _
    $region3: #{tpu_custom_call.1} parent=1 // loop_header
      %s20 = sphi 0, %s24
      %p21 = scmp.ge.s32.totalorder %s20, 4
      %s27 = sphi 0, %s39
      %s28 = sphi 0, %s35
      %s29 = sphi 0, %s27
      %s30 = sphi 0, %s28
      %s31 = sphi 0, %s29
      %s32 = sphi 0, %s30
      %s44 = sphi 0, %s46
      %s47 = sphi 0, %s44
      %s48 = sphi 0, %s47
      %s64 = sphi 0, %s48
      %s70 = sphi 0, %s72
      %s73 = sphi 0, %s70
      %s74 = sphi 0, %s73
      %s90 = sphi 0, %s74
      %s94 = sphi 0, %s94
      %s96 = sphi 0, %s94
      %s97 = sphi 0, %s96
      %s111 = sphi 0, %s97
      %s115 = sphi 0, %s115
      %s117 = sphi 0, %s115
      %s118 = sphi 0, %s117
      %s132 = sphi 0, %s118
      %s136 = sphi 0, %s136
      %s138 = sphi 0, %s136
      %s139 = sphi 0, %s138
      %s153 = sphi 0, %s139
      %s157 = sphi 0, %s157
      %s159 = sphi 0, %s157
      %s160 = sphi 0, %s159
      %s174 = sphi 0, %s160
      %s180 = sphi 0, %s182
      %s183 = sphi 0, %s180
      %s184 = sphi 0, %s183
      %s200 = sphi 0, %s184
    $region4: #{tpu_custom_call.1} parent=1 // loop_header_branch
      %23 = sbr.rel (%p21) target = $region8
    $region5: #{tpu_custom_call.1} parent=1 // loop_body
      %s25 = ssub.s32 %s20, 1
      %s26 = ssub.s32 %s20, 2
      %s33 = sadd.s32 1, %s28
      %p34 = scmp.ge.s32.totalorder %s33, 2
      %s35 = scalar_select %p34, 0, %s33
      %s36 = sadd.s32 1, %s27
      %s37 = scalar_select %p34, %s36, %s27
      %p38 = scmp.ge.s32.totalorder %s37, 1
      %s39 = scalar_select %p38, 0, %s37
      %s40 = ssub.s32 %s27, %s39
      %s41 = ssub.s32 %s28, %s35
      %s42 = sor.u32 %s40, %s41
      %p43 = scmp.eq.s32.totalorder %s42, 0
      %s45 = sadd.s32 %s44, 1
      %s46 = scalar_select %p43, %s44, %s45
      %p49 = pneg %p43
      %p50 = scmp.eq.s32.totalorder %s20, 1
      %p51 = por %p49, %p50
      %p52 = scmp.ne.s32.totalorder %s44, %s47
      %p53 = scmp.eq.s32.totalorder %s20, 0
      %p54 = por %p52, %p53
      %p55 = scmp.ne.s32.totalorder %s44, %s47
      %p56 = scmp.eq.s32.totalorder %s25, 1
      %p57 = por %p55, %p56
      %p58 = scmp.ne.s32.totalorder %s47, %s48
      %p59 = scmp.eq.s32.totalorder %s25, 0
      %p60 = por %p58, %p59
      %p61 = scmp.ne.s32.totalorder %s47, %s48
      %p62 = scmp.eq.s32.totalorder %s26, 1
      %p63 = por %p61, %p62
      %p65 = scmp.ne.s32.totalorder %s48, %s64
      %p66 = scmp.eq.s32.totalorder %s26, 0
      %p67 = por %p65, %p66
      %s68 = ssub.s32 %s28, %s35
      %p69 = scmp.eq.s32.totalorder %s68, 0
      %s71 = sadd.s32 %s70, 1
      %s72 = scalar_select %p69, %s70, %s71
      %p75 = pneg %p69
      %p76 = scmp.eq.s32.totalorder %s20, 1
      %p77 = por %p75, %p76
      %p78 = scmp.ne.s32.totalorder %s70, %s73
      %p79 = scmp.eq.s32.totalorder %s20, 0
      %p80 = por %p78, %p79
      %p81 = scmp.ne.s32.totalorder %s70, %s73
      %p82 = scmp.eq.s32.totalorder %s25, 1
      %p83 = por %p81, %p82
      %p84 = scmp.ne.s32.totalorder %s73, %s74
      %p85 = scmp.eq.s32.totalorder %s25, 0
      %p86 = por %p84, %p85
      %p87 = scmp.ne.s32.totalorder %s73, %s74
      %p88 = scmp.eq.s32.totalorder %s26, 1
      %p89 = por %p87, %p88
      %p91 = scmp.ne.s32.totalorder %s74, %s90
      %p92 = scmp.eq.s32.totalorder %s26, 0
      %p93 = por %p91, %p92
      %s95 = sadd.s32 %s94, 1
      %p98 = scmp.eq.s32.totalorder %s20, 1
      %p99 = scmp.ne.s32.totalorder %s94, %s96
      %p100 = scmp.eq.s32.totalorder %s20, 0
      %p101 = por %p99, %p100
      %p102 = scmp.ne.s32.totalorder %s94, %s96
      %p103 = scmp.eq.s32.totalorder %s25, 1
      %p104 = por %p102, %p103
      %p105 = scmp.ne.s32.totalorder %s96, %s97
      %p106 = scmp.eq.s32.totalorder %s25, 0
      %p107 = por %p105, %p106
      %p108 = scmp.ne.s32.totalorder %s96, %s97
      %p109 = scmp.eq.s32.totalorder %s26, 1
      %p110 = por %p108, %p109
      %p112 = scmp.ne.s32.totalorder %s97, %s111
      %p113 = scmp.eq.s32.totalorder %s26, 0
      %p114 = por %p112, %p113
      %s116 = sadd.s32 %s115, 1
      %p119 = scmp.eq.s32.totalorder %s20, 1
      %p120 = scmp.ne.s32.totalorder %s115, %s117
      %p121 = scmp.eq.s32.totalorder %s20, 0
      %p122 = por %p120, %p121
      %p123 = scmp.ne.s32.totalorder %s115, %s117
      %p124 = scmp.eq.s32.totalorder %s25, 1
      %p125 = por %p123, %p124
      %p126 = scmp.ne.s32.totalorder %s117, %s118
      %p127 = scmp.eq.s32.totalorder %s25, 0
      %p128 = por %p126, %p127
      %p129 = scmp.ne.s32.totalorder %s117, %s118
      %p130 = scmp.eq.s32.totalorder %s26, 1
      %p131 = por %p129, %p130
      %p133 = scmp.ne.s32.totalorder %s118, %s132
      %p134 = scmp.eq.s32.totalorder %s26, 0
      %p135 = por %p133, %p134
      %s137 = sadd.s32 %s136, 1
      %p140 = scmp.eq.s32.totalorder %s20, 1
      %p141 = scmp.ne.s32.totalorder %s136, %s138
      %p142 = scmp.eq.s32.totalorder %s20, 0
      %p143 = por %p141, %p142
      %p144 = scmp.ne.s32.totalorder %s136, %s138
      %p145 = scmp.eq.s32.totalorder %s25, 1
      %p146 = por %p144, %p145
      %p147 = scmp.ne.s32.totalorder %s138, %s139
      %p148 = scmp.eq.s32.totalorder %s25, 0
      %p149 = por %p147, %p148
      %p150 = scmp.ne.s32.totalorder %s138, %s139
      %p151 = scmp.eq.s32.totalorder %s26, 1
      %p152 = por %p150, %p151
      %p154 = scmp.ne.s32.totalorder %s139, %s153
      %p155 = scmp.eq.s32.totalorder %s26, 0
      %p156 = por %p154, %p155
      %s158 = sadd.s32 %s157, 1
      %p161 = scmp.eq.s32.totalorder %s20, 1
      %p162 = scmp.ne.s32.totalorder %s157, %s159
      %p163 = scmp.eq.s32.totalorder %s20, 0
      %p164 = por %p162, %p163
      %p165 = scmp.ne.s32.totalorder %s157, %s159
      %p166 = scmp.eq.s32.totalorder %s25, 1
      %p167 = por %p165, %p166
      %p168 = scmp.ne.s32.totalorder %s159, %s160
      %p169 = scmp.eq.s32.totalorder %s25, 0
      %p170 = por %p168, %p169
      %p171 = scmp.ne.s32.totalorder %s159, %s160
      %p172 = scmp.eq.s32.totalorder %s26, 1
      %p173 = por %p171, %p172
      %p175 = scmp.ne.s32.totalorder %s160, %s174
      %p176 = scmp.eq.s32.totalorder %s26, 0
      %p177 = por %p175, %p176
      %s178 = ssub.s32 %s27, %s39
      %p179 = scmp.eq.s32.totalorder %s178, 0
      %s181 = sadd.s32 %s180, 1
      %s182 = scalar_select %p179, %s180, %s181
      %p185 = pneg %p179
      %p186 = scmp.eq.s32.totalorder %s20, 1
      %p187 = por %p185, %p186
      %p188 = scmp.ne.s32.totalorder %s180, %s183
      %p189 = scmp.eq.s32.totalorder %s20, 0
      %p190 = por %p188, %p189
      %p191 = scmp.ne.s32.totalorder %s180, %s183
      %p192 = scmp.eq.s32.totalorder %s25, 1
      %p193 = por %p191, %p192
      %p194 = scmp.ne.s32.totalorder %s183, %s184
      %p195 = scmp.eq.s32.totalorder %s25, 0
      %p196 = por %p194, %p195
      %p197 = scmp.ne.s32.totalorder %s183, %s184
      %p198 = scmp.eq.s32.totalorder %s26, 1
      %p199 = por %p197, %p198
      %p201 = scmp.ne.s32.totalorder %s184, %s200
      %p202 = scmp.eq.s32.totalorder %s26, 0
      %p203 = por %p201, %p202
      %p204 = scmp.le.s32.totalorder 1, %s20
      %p205 = scmp.lt.s32.totalorder %s20, 3
      %p206 = pnand %p204, %p205
      %p207 = pneg %p206
      // Predicated region
      $region9: #{tpu_custom_call.1} parent=5 // pred_check
        _
      $region10: #{tpu_custom_call.1} parent=5 // pred_check_branch
        %209 = sbr.rel (%p206) target = $region12
      $region11: #{tpu_custom_call.1} parent=5 // pred_region
        %s210 = ssub.s32 %s20, 1
        // Predicated region
        $region13: #{tpu_custom_call.1} parent=11 // pred_check
          %p211 = pneg %p107
        $region14: #{tpu_custom_call.1} parent=11 // pred_check_branch
          %213 = sbr.rel (%p211) target = $region16
        $region15: #{tpu_custom_call.1} parent=11 // pred_region
          _
        $region16: #{tpu_custom_call.1} parent=11 // pred_fallthru
          _
        // Predicated region
        $region17: #{tpu_custom_call.1} parent=11 // pred_check
          %p214 = pneg %p128
        $region18: #{tpu_custom_call.1} parent=11 // pred_check_branch
          %216 = sbr.rel (%p214) target = $region20
        $region19: #{tpu_custom_call.1} parent=11 // pred_region
          %s218 = ssub.s32 1024, 1024
          %219 = vsyncadd [#allocation7], %s218
          %s220 = sshll.u32 [#allocation8], 4
          %s221 = int_to_ptr.vmem [resolvable:$true] %s220
          %226 = dma.hbm_to_vmem [thread:$0]  %s3, 1024, %s221, [#allocation7], 64, 64, 4
        $region20: #{tpu_custom_call.1} parent=11 // pred_fallthru
          _
        // Predicated region
        $region21: #{tpu_custom_call.1} parent=11 // pred_check
          %p227 = pneg %p149
        $region22: #{tpu_custom_call.1} parent=11 // pred_check_branch
          %229 = sbr.rel (%p227) target = $region24
        $region23: #{tpu_custom_call.1} parent=11 // pred_region
          _
        $region24: #{tpu_custom_call.1} parent=11 // pred_fallthru
          _
        // Predicated region
        $region25: #{tpu_custom_call.1} parent=11 // pred_check
          %p230 = pneg %p170
        $region26: #{tpu_custom_call.1} parent=11 // pred_check_branch
          %232 = sbr.rel (%p230) target = $region28
        $region27: #{tpu_custom_call.1} parent=11 // pred_region
          %s234 = ssub.s32 2048, 2048
          %235 = vsyncadd [#allocation10], %s234
          %s236 = sshll.u32 [#allocation9], 4
          %s237 = int_to_ptr.vmem [resolvable:$true] %s236
          %242 = dma.hbm_to_vmem [thread:$0]  %s5, 2048, %s237, [#allocation10], 128, 128, 8
        $region28: #{tpu_custom_call.1} parent=11 // pred_fallthru
          _
      $region12: #{tpu_custom_call.1} parent=5 // pred_fallthru
        _
      %p243 = scmp.lt.s32.totalorder %s20, 2
      // Predicated region
      $region29: #{tpu_custom_call.1} parent=5 // pred_check
        %p244 = pneg %p243
      $region30: #{tpu_custom_call.1} parent=5 // pred_check_branch
        %246 = sbr.rel (%p244) target = $region32
      $region31: #{tpu_custom_call.1} parent=5 // pred_region
        // Predicated region
        $region33: #{tpu_custom_call.1} parent=31 // pred_check
          %p247 = pneg %p54
        $region34: #{tpu_custom_call.1} parent=31 // pred_check_branch
          %249 = sbr.rel (%p247) target = $region36
        $region35: #{tpu_custom_call.1} parent=31 // pred_region
          %s250 = sand.u32 %s44, 1
          %s251 = scalar_lea.sflag [#allocation4], %s250
          %s252 = sand.u32 %s44, 1
          %s253 = smul.addr %s252, 32
          %s254 = scalar_lea.vmem [#allocation3], %s253
          %s255 = smul.u32 2, %s27
          %s256 = smul.u32 4, %s28
          %s258 = ssub.s32 512, 512
          %259 = vsyncadd %s251, %s258
          %s260 = smul.addr %s255, 8
          %s261 = sadd.s32 %s256, %s260
          %s262 = smul.addr %s261, 64
          %s263 = scalar_lea.hbm %s0, %s262
          %s264 = sshll.u32 %s254, 4
          %s265 = int_to_ptr.vmem [resolvable:$true] %s264
          %270 = dma.hbm_to_vmem [thread:$0]  %s263, 512, %s265, %s251, 512, 256, 16
        $region36: #{tpu_custom_call.1} parent=31 // pred_fallthru
          _
        // Predicated region
        $region37: #{tpu_custom_call.1} parent=31 // pred_check
          %p271 = pneg %p80
        $region38: #{tpu_custom_call.1} parent=31 // pred_check_branch
          %273 = sbr.rel (%p271) target = $region40
        $region39: #{tpu_custom_call.1} parent=31 // pred_region
          %s274 = sand.u32 %s20, 1
          %s275 = scalar_lea.sflag [#allocation7], %s274
          %s276 = sand.u32 %s70, 1
          %s277 = smul.addr %s276, 256
          %s278 = scalar_lea.vmem [#allocation6], %s277
          %s279 = smul.u32 64, %s28
          %s281 = ssub.s32 4096, 4096
          %282 = vsyncadd %s275, %s281
          %s283 = smul.addr %s279, 64
          %s284 = scalar_lea.hbm %s1, %s283
          %s285 = sshll.u32 %s278, 4
          %s286 = int_to_ptr.vmem [resolvable:$true] %s285
          %291 = dma.hbm_to_vmem [thread:$0]  %s284, 4096, %s286, %s275, 64, 64, 4
        $region40: #{tpu_custom_call.1} parent=31 // pred_fallthru
          _
      $region32: #{tpu_custom_call.1} parent=5 // pred_fallthru
        _
      %p292 = scmp.le.s32.totalorder 1, %s20
      %p293 = scmp.lt.s32.totalorder %s20, 3
      %p294 = pnand %p292, %p293
      %p295 = pneg %p294
      // Predicated region
      $region41: #{tpu_custom_call.1} parent=5 // pred_check
        _
      $region42: #{tpu_custom_call.1} parent=5 // pred_check_branch
        %297 = sbr.rel (%p294) target = $region44
      $region43: #{tpu_custom_call.1} parent=5 // pred_region
        %s298 = ssub.s32 %s20, 1
        %s299 = sand.u32 %s47, 1
        %s300 = scalar_lea.sflag [#allocation4], %s299
        %s301 = sand.u32 %s47, 1
        %s302 = smul.addr %s301, 32
        %s303 = scalar_lea.vmem [#allocation3], %s302
        // Predicated region
        $region45: #{tpu_custom_call.1} parent=43 // pred_check
          %p304 = pneg %p60
        $region46: #{tpu_custom_call.1} parent=43 // pred_check_branch
          %306 = sbr.rel (%p304) target = $region48
        $region47: #{tpu_custom_call.1} parent=43 // pred_region
          %307 = dma.done %s300, 512
        $region48: #{tpu_custom_call.1} parent=43 // pred_fallthru
          _
        %s308 = sand.u32 %s25, 1
        %s309 = scalar_lea.sflag [#allocation7], %s308
        %s310 = sand.u32 %s73, 1
        %s311 = smul.addr %s310, 256
        %s312 = scalar_lea.vmem [#allocation6], %s311
        // Predicated region
        $region49: #{tpu_custom_call.1} parent=43 // pred_check
          %p313 = pneg %p86
        $region50: #{tpu_custom_call.1} parent=43 // pred_check_branch
          %315 = sbr.rel (%p313) target = $region52
        $region51: #{tpu_custom_call.1} parent=43 // pred_region
          %316 = dma.done %s309, 4096
        $region52: #{tpu_custom_call.1} parent=43 // pred_fallthru
          _
        // Predicated region
        $region53: #{tpu_custom_call.1} parent=43 // pred_check
          %p317 = pneg %p128
        $region54: #{tpu_custom_call.1} parent=43 // pred_check_branch
          %319 = sbr.rel (%p317) target = $region56
        $region55: #{tpu_custom_call.1} parent=43 // pred_region
          %320 = dma.done [#allocation7], 1024
        $region56: #{tpu_custom_call.1} parent=43 // pred_fallthru
          _
        // Predicated region
        $region57: #{tpu_custom_call.1} parent=43 // pred_check
          %p321 = pneg %p170
        $region58: #{tpu_custom_call.1} parent=43 // pred_check_branch
          %323 = sbr.rel (%p321) target = $region60
        $region59: #{tpu_custom_call.1} parent=43 // pred_region
          %324 = dma.done [#allocation10], 2048
        $region60: #{tpu_custom_call.1} parent=43 // pred_fallthru
          _
        %s325 = sand.u32 %s47, 1
        %s326 = scalar_lea.sflag [#allocation4], %s325
        %s327 = sand.u32 %s47, 1
        %s328 = smul.addr %s327, 32
        %s329 = scalar_lea.vmem [#allocation3], %s328
        %p330 = pneg %p60
        %p331 = pneg %p57
        %s332 = sand.u32 %s25, 1
        %s333 = scalar_lea.sflag [#allocation7], %s332
        %s334 = sand.u32 %s73, 1
        %s335 = smul.addr %s334, 256
        %s336 = scalar_lea.vmem [#allocation6], %s335
        %p337 = pneg %p86
        %p338 = pneg %p83
        %p339 = pneg %p107
        %p340 = pneg %p104
        %p341 = pneg %p128
        %p342 = pneg %p125
        %p343 = pneg %p149
        %p344 = pneg %p146
        %p345 = pneg %p170
        %p346 = pneg %p167
        %p347 = pneg %p196
        %p348 = pneg %p193
        %s349 = smul.u32 2, %s29
        %s350 = smul.u32 4, %s30
        %s351 = smul.u32 64, %s30
        %s352 = smul.u32 2, %s29
        %p354 = scmp.eq.s32.totalorder %s30, 0
        // Predicated region
        $region61: #{tpu_custom_call.1} parent=43 // pred_check
          %p355 = pneg %p354
        $region62: #{tpu_custom_call.1} parent=43 // pred_check_branch
          %357 = sbr.rel (%p355) target = $region64
        $region63: #{tpu_custom_call.1} parent=43 // pred_region
          %358 = vst [vmem:[#allocation2] sm:$0xff] 0.0
          %359 = vst [vmem:[#allocation2 + $0x8] sm:$0xff] 0.0
        $region64: #{tpu_custom_call.1} parent=43 // pred_fallthru
          _
        %v360 = vld [vmem:[#allocation2] sm:$0xff]
        %v361 = vld [vmem:[#allocation2 + $0x8] sm:$0xff]
        %v362 = vld [vmem:[%s303] sm:$0xff]
        %v363 = vld [vmem:[%s303 + $0x8] sm:$0xff]
        %v364 = vld [vmem:[%s303 + $0x10] sm:$0xff]
        %v365 = vld [vmem:[%s303 + $0x18] sm:$0xff]
        %v366 = vld [vmem:[%s312] sm:$0xf]
        %v367 = vld [vmem:[%s312 + $0x4] sm:$0xf]
        %v368 = vld [vmem:[%s312 + $0x8] sm:$0xf]
        %v369 = vld [vmem:[%s312 + $0xc] sm:$0xf]
        %v370 = vld [vmem:[%s312 + $0x10] sm:$0xf]
        %v371 = vld [vmem:[%s312 + $0x14] sm:$0xf]
        %v372 = vld [vmem:[%s312 + $0x18] sm:$0xf]
        %v373 = vld [vmem:[%s312 + $0x1c] sm:$0xf]
        %v374 = vld [vmem:[%s312 + $0x20] sm:$0xf]
        %v375 = vld [vmem:[%s312 + $0x24] sm:$0xf]
        %v376 = vld [vmem:[%s312 + $0x28] sm:$0xf]
        %v377 = vld [vmem:[%s312 + $0x2c] sm:$0xf]
        %v378 = vld [vmem:[%s312 + $0x30] sm:$0xf]
        %v379 = vld [vmem:[%s312 + $0x34] sm:$0xf]
        %v380 = vld [vmem:[%s312 + $0x38] sm:$0xf]
        %v381 = vld [vmem:[%s312 + $0x3c] sm:$0xf]
        %v382 = vld [vmem:[%s312 + $0x40] sm:$0xf]
        %v383 = vld [vmem:[%s312 + $0x44] sm:$0xf]
        %v384 = vld [vmem:[%s312 + $0x48] sm:$0xf]
        %v385 = vld [vmem:[%s312 + $0x4c] sm:$0xf]
        %v386 = vld [vmem:[%s312 + $0x50] sm:$0xf]
        %v387 = vld [vmem:[%s312 + $0x54] sm:$0xf]
        %v388 = vld [vmem:[%s312 + $0x58] sm:$0xf]
        %v389 = vld [vmem:[%s312 + $0x5c] sm:$0xf]
        %v390 = vld [vmem:[%s312 + $0x60] sm:$0xf]
        %v391 = vld [vmem:[%s312 + $0x64] sm:$0xf]
        %v392 = vld [vmem:[%s312 + $0x68] sm:$0xf]
        %v393 = vld [vmem:[%s312 + $0x6c] sm:$0xf]
        %v394 = vld [vmem:[%s312 + $0x70] sm:$0xf]
        %v395 = vld [vmem:[%s312 + $0x74] sm:$0xf]
        %v396 = vld [vmem:[%s312 + $0x78] sm:$0xf]
        %v397 = vld [vmem:[%s312 + $0x7c] sm:$0xf]
        %v398 = vld [vmem:[%s312 + $0x80] sm:$0xf]
        %v399 = vld [vmem:[%s312 + $0x84] sm:$0xf]
        %v400 = vld [vmem:[%s312 + $0x88] sm:$0xf]
        %v401 = vld [vmem:[%s312 + $0x8c] sm:$0xf]
        %v402 = vld [vmem:[%s312 + $0x90] sm:$0xf]
        %v403 = vld [vmem:[%s312 + $0x94] sm:$0xf]
        %v404 = vld [vmem:[%s312 + $0x98] sm:$0xf]
        %v405 = vld [vmem:[%s312 + $0x9c] sm:$0xf]
        %v406 = vld [vmem:[%s312 + $0xa0] sm:$0xf]
        %v407 = vld [vmem:[%s312 + $0xa4] sm:$0xf]
        %v408 = vld [vmem:[%s312 + $0xa8] sm:$0xf]
        %v409 = vld [vmem:[%s312 + $0xac] sm:$0xf]
        %v410 = vld [vmem:[%s312 + $0xb0] sm:$0xf]
        %v411 = vld [vmem:[%s312 + $0xb4] sm:$0xf]
        %v412 = vld [vmem:[%s312 + $0xb8] sm:$0xf]
        %v413 = vld [vmem:[%s312 + $0xbc] sm:$0xf]
        %v414 = vld [vmem:[%s312 + $0xc0] sm:$0xf]
        %v415 = vld [vmem:[%s312 + $0xc4] sm:$0xf]
        %v416 = vld [vmem:[%s312 + $0xc8] sm:$0xf]
        %v417 = vld [vmem:[%s312 + $0xcc] sm:$0xf]
        %v418 = vld [vmem:[%s312 + $0xd0] sm:$0xf]
        %v419 = vld [vmem:[%s312 + $0xd4] sm:$0xf]
        %v420 = vld [vmem:[%s312 + $0xd8] sm:$0xf]
        %v421 = vld [vmem:[%s312 + $0xdc] sm:$0xf]
        %v422 = vld [vmem:[%s312 + $0xe0] sm:$0xf]
        %v423 = vld [vmem:[%s312 + $0xe4] sm:$0xf]
        %v424 = vld [vmem:[%s312 + $0xe8] sm:$0xf]
        %v425 = vld [vmem:[%s312 + $0xec] sm:$0xf]
        %v426 = vld [vmem:[%s312 + $0xf0] sm:$0xf]
        %v427 = vld [vmem:[%s312 + $0xf4] sm:$0xf]
        %v428 = vld [vmem:[%s312 + $0xf8] sm:$0xf]
        %v429 = vld [vmem:[%s312 + $0xfc] sm:$0xf]
        %v434 = vunpack.c.l.b16 %v362
        %v435 = vunpack.c.h.b16 %v362
        %v436 = vunpack.c.l.b16 %v363
        %v437 = vunpack.c.h.b16 %v363
        %v438 = vunpack.c.l.b16 %v364
        %v439 = vunpack.c.h.b16 %v364
        %v440 = vunpack.c.l.b16 %v365
        %v441 = vunpack.c.h.b16 %v365
        %v442 = vpack.c.b16 %v438, %v434
        %v443 = vpack.c.b16 %v439, %v435
        %v444 = vpack.c.b16 %v440, %v436
        %v445 = vpack.c.b16 %v441, %v437
        %v514 = vunpack.c.l.b16 %v366
        %v515 = vunpack.c.l.b16 %v367
        %v516 = vunpack.c.l.b16 %v368
        %v517 = vunpack.c.l.b16 %v369
        %v518 = vunpack.c.l.b16 %v370
        %v519 = vunpack.c.l.b16 %v371
        %v520 = vunpack.c.l.b16 %v372
        %v521 = vunpack.c.l.b16 %v373
        %v522 = vunpack.c.l.b16 %v374
        %v523 = vunpack.c.l.b16 %v375
        %v524 = vunpack.c.l.b16 %v376
        %v525 = vunpack.c.l.b16 %v377
        %v526 = vunpack.c.l.b16 %v378
        %v527 = vunpack.c.l.b16 %v379
        %v528 = vunpack.c.l.b16 %v380
        %v529 = vunpack.c.l.b16 %v381
        %v530 = vunpack.c.l.b16 %v382
        %v531 = vunpack.c.l.b16 %v383
        %v532 = vunpack.c.l.b16 %v384
        %v533 = vunpack.c.l.b16 %v385
        %v534 = vunpack.c.l.b16 %v386
        %v535 = vunpack.c.l.b16 %v387
        %v536 = vunpack.c.l.b16 %v388
        %v537 = vunpack.c.l.b16 %v389
        %v538 = vunpack.c.l.b16 %v390
        %v539 = vunpack.c.l.b16 %v391
        %v540 = vunpack.c.l.b16 %v392
        %v541 = vunpack.c.l.b16 %v393
        %v542 = vunpack.c.l.b16 %v394
        %v543 = vunpack.c.l.b16 %v395
        %v544 = vunpack.c.l.b16 %v396
        %v545 = vunpack.c.l.b16 %v397
        %v546 = vunpack.c.l.b16 %v398
        %v547 = vunpack.c.l.b16 %v399
        %v548 = vunpack.c.l.b16 %v400
        %v549 = vunpack.c.l.b16 %v401
        %v550 = vunpack.c.l.b16 %v402
        %v551 = vunpack.c.l.b16 %v403
        %v552 = vunpack.c.l.b16 %v404
        %v553 = vunpack.c.l.b16 %v405
        %v554 = vunpack.c.l.b16 %v406
        %v555 = vunpack.c.l.b16 %v407
        %v556 = vunpack.c.l.b16 %v408
        %v557 = vunpack.c.l.b16 %v409
        %v558 = vunpack.c.l.b16 %v410
        %v559 = vunpack.c.l.b16 %v411
        %v560 = vunpack.c.l.b16 %v412
        %v561 = vunpack.c.l.b16 %v413
        %v562 = vunpack.c.l.b16 %v414
        %v563 = vunpack.c.l.b16 %v415
        %v564 = vunpack.c.l.b16 %v416
        %v565 = vunpack.c.l.b16 %v417
        %v566 = vunpack.c.l.b16 %v418
        %v567 = vunpack.c.l.b16 %v419
        %v568 = vunpack.c.l.b16 %v420
        %v569 = vunpack.c.l.b16 %v421
        %v570 = vunpack.c.l.b16 %v422
        %v571 = vunpack.c.l.b16 %v423
        %v572 = vunpack.c.l.b16 %v424
        %v573 = vunpack.c.l.b16 %v425
        %v574 = vunpack.c.l.b16 %v426
        %v575 = vunpack.c.l.b16 %v427
        %v576 = vunpack.c.l.b16 %v428
        %v577 = vunpack.c.l.b16 %v429
        %v578 = vpack.c.b16 %v515, %v514
        %v579 = vpack.c.b16 %v517, %v516
        %v580 = vpack.c.b16 %v519, %v518
        %v581 = vpack.c.b16 %v521, %v520
        %v582 = vpack.c.b16 %v523, %v522
        %v583 = vpack.c.b16 %v525, %v524
        %v584 = vpack.c.b16 %v527, %v526
        %v585 = vpack.c.b16 %v529, %v528
        %v586 = vpack.c.b16 %v531, %v530
        %v587 = vpack.c.b16 %v533, %v532
        %v588 = vpack.c.b16 %v535, %v534
        %v589 = vpack.c.b16 %v537, %v536
        %v590 = vpack.c.b16 %v539, %v538
        %v591 = vpack.c.b16 %v541, %v540
        %v592 = vpack.c.b16 %v543, %v542
        %v593 = vpack.c.b16 %v545, %v544
        %v594 = vpack.c.b16 %v547, %v546
        %v595 = vpack.c.b16 %v549, %v548
        %v596 = vpack.c.b16 %v551, %v550
        %v597 = vpack.c.b16 %v553, %v552
        %v598 = vpack.c.b16 %v555, %v554
        %v599 = vpack.c.b16 %v557, %v556
        %v600 = vpack.c.b16 %v559, %v558
        %v601 = vpack.c.b16 %v561, %v560
        %v602 = vpack.c.b16 %v563, %v562
        %v603 = vpack.c.b16 %v565, %v564
        %v604 = vpack.c.b16 %v567, %v566
        %v605 = vpack.c.b16 %v569, %v568
        %v606 = vpack.c.b16 %v571, %v570
        %v607 = vpack.c.b16 %v573, %v572
        %v608 = vpack.c.b16 %v575, %v574
        %v609 = vpack.c.b16 %v577, %v576
        %642 = vmatprep.subr.bf16.mxu0 0
        %643 = vmatpush1.bf16.msra.mxu0 %v578
        %644 = vmatprep.subr.bf16.mxu0 0
        %645 = vmatpush1.bf16.msra.mxu0 %v579
        %646 = vmatprep.subr.bf16.mxu0 0
        %647 = vmatpush1.bf16.msra.mxu0 %v580
        %648 = vmatprep.subr.bf16.mxu0 0
        %649 = vmatpush1.bf16.msra.mxu0 %v581
        %650 = vmatprep.subr.bf16.mxu0 0
        %651 = vmatpush1.bf16.msra.mxu0 %v582
        %652 = vmatprep.subr.bf16.mxu0 0
        %653 = vmatpush1.bf16.msra.mxu0 %v583
        %654 = vmatprep.subr.bf16.mxu0 0
        %655 = vmatpush1.bf16.msra.mxu0 %v584
        %656 = vmatprep.subr.bf16.mxu0 0
        %657 = vmatpush1.bf16.msra.mxu0 %v585
        %658 = vmatprep.subr.bf16.mxu0 0
        %659 = vmatpush1.bf16.msra.mxu0 %v586
        %660 = vmatprep.subr.bf16.mxu0 0
        %661 = vmatpush1.bf16.msra.mxu0 %v587
        %662 = vmatprep.subr.bf16.mxu0 0
        %663 = vmatpush1.bf16.msra.mxu0 %v588
        %664 = vmatprep.subr.bf16.mxu0 0
        %665 = vmatpush1.bf16.msra.mxu0 %v589
        %666 = vmatprep.subr.bf16.mxu0 0
        %667 = vmatpush1.bf16.msra.mxu0 %v590
        %668 = vmatprep.subr.bf16.mxu0 0
        %669 = vmatpush1.bf16.msra.mxu0 %v591
        %670 = vmatprep.subr.bf16.mxu0 0
        %671 = vmatpush1.bf16.msra.mxu0 %v592
        %672 = vmatprep.subr.bf16.mxu0 0
        %673 = vmatpush1.bf16.msra.mxu0 %v593
        %674 = vmatprep.mubr.bf16.mxu0 %v443
        %675 = vmatmul.mubr.bf16.gmra.mrb[0].mxu0 %v442
        %v676 = vpop.f32.mrb[0].mxu0
        %v677 = vadd.f32 0.0, %v676
        %v678 = vpop.f32.mrb[0].mxu0
        %v679 = vpop.f32.mrb[0].mxu0
        %v680 = vadd.f32 0.0, %v679
        %v681 = vpop.f32.mrb[0].mxu0
        %682 = vdwg.mxu0
        %683 = vmatprep.subr.bf16.mxu0 0
        %684 = vmatpush1.bf16.msra.mxu0 %v594
        %685 = vmatprep.subr.bf16.mxu0 0
        %686 = vmatpush1.bf16.msra.mxu0 %v595
        %687 = vmatprep.subr.bf16.mxu0 0
        %688 = vmatpush1.bf16.msra.mxu0 %v596
        %689 = vmatprep.subr.bf16.mxu0 0
        %690 = vmatpush1.bf16.msra.mxu0 %v597
        %691 = vmatprep.subr.bf16.mxu0 0
        %692 = vmatpush1.bf16.msra.mxu0 %v598
        %693 = vmatprep.subr.bf16.mxu0 0
        %694 = vmatpush1.bf16.msra.mxu0 %v599
        %695 = vmatprep.subr.bf16.mxu0 0
        %696 = vmatpush1.bf16.msra.mxu0 %v600
        %697 = vmatprep.subr.bf16.mxu0 0
        %698 = vmatpush1.bf16.msra.mxu0 %v601
        %699 = vmatprep.subr.bf16.mxu0 0
        %700 = vmatpush1.bf16.msra.mxu0 %v602
        %701 = vmatprep.subr.bf16.mxu0 0
        %702 = vmatpush1.bf16.msra.mxu0 %v603
        %703 = vmatprep.subr.bf16.mxu0 0
        %704 = vmatpush1.bf16.msra.mxu0 %v604
        %705 = vmatprep.subr.bf16.mxu0 0
        %706 = vmatpush1.bf16.msra.mxu0 %v605
        %707 = vmatprep.subr.bf16.mxu0 0
        %708 = vmatpush1.bf16.msra.mxu0 %v606
        %709 = vmatprep.subr.bf16.mxu0 0
        %710 = vmatpush1.bf16.msra.mxu0 %v607
        %711 = vmatprep.subr.bf16.mxu0 0
        %712 = vmatpush1.bf16.msra.mxu0 %v608
        %713 = vmatprep.subr.bf16.mxu0 0
        %714 = vmatpush1.bf16.msra.mxu0 %v609
        %715 = vmatprep.mubr.bf16.mxu0 %v445
        %716 = vmatmul.mubr.bf16.gmra.mrb[0].mxu0 %v444
        %v717 = vpop.f32.mrb[0].mxu0
        %v718 = vadd.f32 %v677, %v717
        %v719 = vpop.f32.mrb[0].mxu0
        %v720 = vpop.f32.mrb[0].mxu0
        %v721 = vadd.f32 %v680, %v720
        %v722 = vpop.f32.mrb[0].mxu0
        %723 = vdwg.mxu0
        %v724 = vadd.f32 %v360, %v718
        %v725 = vadd.f32 %v361, %v721
        %726 = vst [vmem:[#allocation2] sm:$0xff] %v724
        %727 = vst [vmem:[#allocation2 + $0x8] sm:$0xff] %v725
        %p728 = scmp.eq.s32.totalorder %s30, 1
        // Predicated region
        $region65: #{tpu_custom_call.1} parent=43 // pred_check
          %p729 = pneg %p728
        $region66: #{tpu_custom_call.1} parent=43 // pred_check_branch
          %731 = sbr.rel (%p729) target = $region68
        $region67: #{tpu_custom_call.1} parent=43 // pred_region
          %v732 = vld [vmem:[#allocation2] sm:$0xff]
          %v733 = vld [vmem:[#allocation2 + $0x8] sm:$0xff]
          %v734 = vld [vmem:[%s2] sm:$0x1]
          %v736 = vlaneseq
          %v737 = vshrl.u32 %v736, 7
          %v738 = vsub.s32 0, %v737
          %v739 = vrot.slane %v734, %v738
          %v741 = vadd.f32 %v732, %v739
          %v742 = vadd.f32 %v733, %v739
          %v743 = vmax.f32 %v741, 0.0
          %v744 = vmax.f32 %v742, 0.0
          %v745 = vpack.c.bf16 %v744, %v743
          %v746 = vld [vmem:[#allocation8] sm:$0xf]
          %v747 = vld [vmem:[#allocation8 + $0x4] sm:$0xf]
          %v748 = vld [vmem:[#allocation8 + $0x8] sm:$0xf]
          %v749 = vld [vmem:[#allocation8 + $0xc] sm:$0xf]
          %v750 = vld [vmem:[#allocation8 + $0x10] sm:$0xf]
          %v751 = vld [vmem:[#allocation8 + $0x14] sm:$0xf]
          %v752 = vld [vmem:[#allocation8 + $0x18] sm:$0xf]
          %v753 = vld [vmem:[#allocation8 + $0x1c] sm:$0xf]
          %v754 = vld [vmem:[#allocation8 + $0x20] sm:$0xf]
          %v755 = vld [vmem:[#allocation8 + $0x24] sm:$0xf]
          %v756 = vld [vmem:[#allocation8 + $0x28] sm:$0xf]
          %v757 = vld [vmem:[#allocation8 + $0x2c] sm:$0xf]
          %v758 = vld [vmem:[#allocation8 + $0x30] sm:$0xf]
          %v759 = vld [vmem:[#allocation8 + $0x34] sm:$0xf]
          %v760 = vld [vmem:[#allocation8 + $0x38] sm:$0xf]
          %v761 = vld [vmem:[#allocation8 + $0x3c] sm:$0xf]
          %v778 = vunpack.c.l.b16 %v746
          %v779 = vunpack.c.l.b16 %v747
          %v780 = vunpack.c.l.b16 %v748
          %v781 = vunpack.c.l.b16 %v749
          %v782 = vunpack.c.l.b16 %v750
          %v783 = vunpack.c.l.b16 %v751
          %v784 = vunpack.c.l.b16 %v752
          %v785 = vunpack.c.l.b16 %v753
          %v786 = vunpack.c.l.b16 %v754
          %v787 = vunpack.c.l.b16 %v755
          %v788 = vunpack.c.l.b16 %v756
          %v789 = vunpack.c.l.b16 %v757
          %v790 = vunpack.c.l.b16 %v758
          %v791 = vunpack.c.l.b16 %v759
          %v792 = vunpack.c.l.b16 %v760
          %v793 = vunpack.c.l.b16 %v761
          %v794 = vpack.c.b16 %v779, %v778
          %v795 = vpack.c.b16 %v781, %v780
          %v796 = vpack.c.b16 %v783, %v782
          %v797 = vpack.c.b16 %v785, %v784
          %v798 = vpack.c.b16 %v787, %v786
          %v799 = vpack.c.b16 %v789, %v788
          %v800 = vpack.c.b16 %v791, %v790
          %v801 = vpack.c.b16 %v793, %v792
          %810 = vmatprep.subr.bf16.mxu0 0
          %811 = vmatpush1.bf16.msra.mxu0 %v794
          %812 = vmatprep.subr.bf16.mxu0 0
          %813 = vmatpush1.bf16.msra.mxu0 %v795
          %814 = vmatprep.subr.bf16.mxu0 0
          %815 = vmatpush1.bf16.msra.mxu0 %v796
          %816 = vmatprep.subr.bf16.mxu0 0
          %817 = vmatpush1.bf16.msra.mxu0 %v797
          %818 = vmatprep.subr.bf16.mxu0 0
          %819 = vmatpush1.bf16.msra.mxu0 %v798
          %820 = vmatprep.subr.bf16.mxu0 0
          %821 = vmatpush1.bf16.msra.mxu0 %v799
          %822 = vmatprep.subr.bf16.mxu0 0
          %823 = vmatpush1.bf16.msra.mxu0 %v800
          %824 = vmatprep.subr.bf16.mxu0 0
          %825 = vmatpush1.bf16.msra.mxu0 %v801
          %826 = vmatprep.subr.bf16.mxu0 0
          %827 = vmatpush1.bf16.msra.mxu0 0
          %828 = vmatprep.subr.bf16.mxu0 0
          %829 = vmatpush1.bf16.msra.mxu0 0
          %830 = vmatprep.subr.bf16.mxu0 0
          %831 = vmatpush1.bf16.msra.mxu0 0
          %832 = vmatprep.subr.bf16.mxu0 0
          %833 = vmatpush1.bf16.msra.mxu0 0
          %834 = vmatprep.subr.bf16.mxu0 0
          %835 = vmatpush1.bf16.msra.mxu0 0
          %836 = vmatprep.subr.bf16.mxu0 0
          %837 = vmatpush1.bf16.msra.mxu0 0
          %838 = vmatprep.subr.bf16.mxu0 0
          %839 = vmatpush1.bf16.msra.mxu0 0
          %840 = vmatprep.subr.bf16.mxu0 0
          %841 = vmatpush1.bf16.msra.mxu0 0
          %842 = vmatprep.mubr.bf16.mxu0 0
          %843 = vmatmul.mubr.bf16.gmra.mrb[0].mxu0 %v745
          %v844 = vpop.f32.mrb[0].mxu0
          %v845 = vadd.f32 0.0, %v844
          %v846 = vpop.f32.mrb[0].mxu0
          %v847 = vpop.f32.mrb[0].mxu0
          %v848 = vadd.f32 0.0, %v847
          %v849 = vpop.f32.mrb[0].mxu0
          %850 = vdwg.mxu0
          %v851 = vld [vmem:[%s4] sm:$0x1]
          %v853 = vlaneseq
          %v854 = vshrl.u32 %v853, 7
          %v855 = vsub.s32 0, %v854
          %v856 = vrot.slane %v851, %v855
          %v858 = vsub.f32 %v845, %v856
          %v859 = vsub.f32 %v848, %v856
          %v860 = vmul.f32 %v858, %v858
          %v861 = vmul.f32 %v859, %v859
          %v862 = vld [vmem:[#allocation9] sm:$0xff]
          %v863 = vld [vmem:[#allocation9 + $0x8] sm:$0xff]
          %v864 = vld [vmem:[#allocation9 + $0x10] sm:$0xff]
          %v865 = vld [vmem:[#allocation9 + $0x18] sm:$0xff]
          %v866 = vld [vmem:[#allocation9 + $0x20] sm:$0xff]
          %v867 = vld [vmem:[#allocation9 + $0x28] sm:$0xff]
          %v868 = vld [vmem:[#allocation9 + $0x30] sm:$0xff]
          %v869 = vld [vmem:[#allocation9 + $0x38] sm:$0xff]
          %v870 = vld [vmem:[#allocation9 + $0x40] sm:$0xff]
          %v871 = vld [vmem:[#allocation9 + $0x48] sm:$0xff]
          %v872 = vld [vmem:[#allocation9 + $0x50] sm:$0xff]
          %v873 = vld [vmem:[#allocation9 + $0x58] sm:$0xff]
          %v874 = vld [vmem:[#allocation9 + $0x60] sm:$0xff]
          %v875 = vld [vmem:[#allocation9 + $0x68] sm:$0xff]
          %v876 = vld [vmem:[#allocation9 + $0x70] sm:$0xff]
          %v877 = vld [vmem:[#allocation9 + $0x78] sm:$0xff]
          %878 = vmatprep.subr.mxu0 0.0
          %879 = vmatpush1.msra.mxu0 %v862
          %880 = vmatprep.subr.mxu0 0.0
          %881 = vmatpush1.msra.mxu0 %v863
          %882 = vmatprep.subr.mxu0 0.0
          %883 = vmatpush1.msra.mxu0 %v864
          %884 = vmatprep.subr.mxu0 0.0
          %885 = vmatpush1.msra.mxu0 %v865
          %886 = vmatprep.subr.mxu0 0.0
          %887 = vmatpush1.msra.mxu0 %v866
          %888 = vmatprep.subr.mxu0 0.0
          %889 = vmatpush1.msra.mxu0 %v867
          %890 = vmatprep.subr.mxu0 0.0
          %891 = vmatpush1.msra.mxu0 %v868
          %892 = vmatprep.subr.mxu0 0.0
          %893 = vmatpush1.msra.mxu0 %v869
          %894 = vmatprep.subr.mxu0 0.0
          %895 = vmatpush1.msra.mxu0 %v870
          %896 = vmatprep.subr.mxu0 0.0
          %897 = vmatpush1.msra.mxu0 %v871
          %898 = vmatprep.subr.mxu0 0.0
          %899 = vmatpush1.msra.mxu0 %v872
          %900 = vmatprep.subr.mxu0 0.0
          %901 = vmatpush1.msra.mxu0 %v873
          %902 = vmatprep.subr.mxu0 0.0
          %903 = vmatpush1.msra.mxu0 %v874
          %904 = vmatprep.subr.mxu0 0.0
          %905 = vmatpush1.msra.mxu0 %v875
          %906 = vmatprep.subr.mxu0 0.0
          %907 = vmatpush1.msra.mxu0 %v876
          %908 = vmatprep.subr.mxu0 0.0
          %909 = vmatpush1.msra.mxu0 %v877
          %910 = vmatprep.subr.mxu0 0.0
          %911 = vmatpush1.msra.mxu0 0.0
          %912 = vmatprep.subr.mxu0 0.0
          %913 = vmatpush1.msra.mxu0 0.0
          %914 = vmatprep.subr.mxu0 0.0
          %915 = vmatpush1.msra.mxu0 0.0
          %916 = vmatprep.subr.mxu0 0.0
          %917 = vmatpush1.msra.mxu0 0.0
          %918 = vmatprep.subr.mxu0 0.0
          %919 = vmatpush1.msra.mxu0 0.0
          %920 = vmatprep.subr.mxu0 0.0
          %921 = vmatpush1.msra.mxu0 0.0
          %922 = vmatprep.subr.mxu0 0.0
          %923 = vmatpush1.msra.mxu0 0.0
          %924 = vmatprep.subr.mxu0 0.0
          %925 = vmatpush1.msra.mxu0 0.0
          %926 = vmatprep.subr.mxu0 0.0
          %927 = vmatpush1.msra.mxu0 0.0
          %928 = vmatprep.subr.mxu0 0.0
          %929 = vmatpush1.msra.mxu0 0.0
          %930 = vmatprep.subr.mxu0 0.0
          %931 = vmatpush1.msra.mxu0 0.0
          %932 = vmatprep.subr.mxu0 0.0
          %933 = vmatpush1.msra.mxu0 0.0
          %934 = vmatprep.subr.mxu0 0.0
          %935 = vmatpush1.msra.mxu0 0.0
          %936 = vmatprep.subr.mxu0 0.0
          %937 = vmatpush1.msra.mxu0 0.0
          %938 = vmatprep.subr.mxu0 0.0
          %939 = vmatpush1.msra.mxu0 0.0
          %940 = vmatprep.subr.mxu0 0.0
          %941 = vmatpush1.msra.mxu0 0.0
          %942 = vmatprep.mubr.f32.mxu0 0.0
          %943 = vmatmul.mubr.f32.gmra.mrb[0].mxu0 %v860
          %v944 = vpop.f32.mrb[0].mxu0
          %v945 = vadd.f32 0.0, %v944
          %v946 = vpop.f32.mrb[0].mxu0
          %947 = vmatprep.mubr.f32.mxu0 0.0
          %948 = vmatmul.mubr.f32.gmra.mrb[0].mxu0 %v861
          %v949 = vpop.f32.mrb[0].mxu0
          %v950 = vadd.f32 0.0, %v949
          %v951 = vpop.f32.mrb[0].mxu0
          %952 = vdwg.mxu0
          %v953 = vsub.f32 0.0, %v945
          %v954 = vsub.f32 0.0, %v950
          %v955 = vmul.f32 %v953, 50.0
          %v956 = vmul.f32 %v954, 50.0
          %v957 = vmul.f32 %v955, 1.442695
          %v958 = vpow.pop %v957
          %v959 = vmul.f32 %v956, 1.442695
          %v960 = vpow.pop %v959
          %961 = vst [vmem:[#allocation11] sm:$0xff] %v958
          %962 = vst [vmem:[#allocation11 + $0x8] sm:$0xff] %v960
        $region68: #{tpu_custom_call.1} parent=43 // pred_fallthru
          _
        // Predicated region
        $region69: #{tpu_custom_call.1} parent=43 // pred_check
          %p963 = pneg %p193
        $region70: #{tpu_custom_call.1} parent=43 // pred_check_branch
          %965 = sbr.rel (%p963) target = $region72
        $region71: #{tpu_custom_call.1} parent=43 // pred_region
          %s966 = smul.u32 2, %s29
          %s968 = ssub.s32 256, 256
          %969 = vsyncadd [#allocation5], %s968
          %s970 = smul.addr %s966, 128
          %s971 = scalar_lea.hbm %s6, %s970
          %s972 = sshll.u32 [#allocation11], 4
          %s973 = int_to_ptr.vmem [resolvable:$true] %s972
          %978 = dma.vmem_to_hbm [thread:$0]  %s973, 256, %s971, [#allocation5], 128, 128, 8
        $region72: #{tpu_custom_call.1} parent=43 // pred_fallthru
          _
        // Predicated region
        $region73: #{tpu_custom_call.1} parent=43 // pred_check
          %p979 = pneg %p193
        $region74: #{tpu_custom_call.1} parent=43 // pred_check_branch
          %981 = sbr.rel (%p979) target = $region76
        $region75: #{tpu_custom_call.1} parent=43 // pred_region
          %982 = dma.done [#allocation5], 256
        $region76: #{tpu_custom_call.1} parent=43 // pred_fallthru
          _
      $region44: #{tpu_custom_call.1} parent=5 // pred_fallthru
        _
      %p983 = scmp.le.s32.totalorder 2, %s20
      // Predicated region
      $region77: #{tpu_custom_call.1} parent=5 // pred_check
        %p984 = pneg %p983
      $region78: #{tpu_custom_call.1} parent=5 // pred_check_branch
        %986 = sbr.rel (%p984) target = $region80
      $region79: #{tpu_custom_call.1} parent=5 // pred_region
        %s987 = ssub.s32 %s20, 2
      $region80: #{tpu_custom_call.1} parent=5 // pred_fallthru
        _
    $region6: #{tpu_custom_call.1} parent=1 // loop_footer
      %s24 = sadd.s32 1, %s20
    $region7: #{tpu_custom_call.1} parent=1 // loop_footer_branch
      %19 = sbr.rel target = $region3
    $region8: #{tpu_custom_call.1} parent=1 // loop_exit
      _
    %988 = vsyncpa [#allocation4], 1
    %s989 = scalar_lea.sflag [#allocation4], 1
    %990 = vsyncpa %s989, 1
    %991 = vsyncpa [#allocation7], 1
    %s992 = scalar_lea.sflag [#allocation7], 1
    %993 = vsyncpa %s992, 1
    %994 = vsyncpa [#allocation10], 1
    %995 = vsyncpa [#allocation5], 1
    %s996 = scalar_lea.sflag [#allocation5], 1
    %997 = vsyncpa %s996, 1

</llo_original>
